<compile_context>
chip_gen: v7x
topology: tpu7x:2x2x1
jax: 0.10.0
libtpu: 0.0.40
codegen_flags: <defaults>
</compile_context>

<pallas_src>
import functools

import jax
import jax.numpy as jnp
from jax.experimental import pallas as pl
from jax.experimental.pallas import tpu as pltpu


# --------------------------------------------------------------------------- #
# Tiling helpers
# --------------------------------------------------------------------------- #
_TM = 512      # max rows per output tile
_TN = 1024     # max cols per output tile (streaming path)
_TK = 2048     # max reduction tile


def _cdiv(a: int, b: int) -> int:
    return -(-a // b)


def _round_up(a: int, b: int) -> int:
    return _cdiv(a, b) * b


def _tile(dim: int, max_tile: int, align: int):
    """Pick a tile <= max_tile (aligned) that minimises padding of `dim`."""
    d = _round_up(dim, align)
    n = _cdiv(d, max_tile)
    t = _round_up(_cdiv(d, n), align)
    return t, t * n


def _pick_m_tile(M: int):
    """Row tile. Prefer >=2 M blocks so both v7x TensorCores get work."""
    Ma = _round_up(M, 16)          # 16-row multiple is safe for f32 and bf16
    if Ma <= 32:
        return Ma, Ma
    n = max(2, _cdiv(Ma, _TM))
    tm = _round_up(_cdiv(Ma, n), 16)
    return tm, tm * n


def _vmem_capacity_bytes() -> int:
    try:
        return int(pltpu.get_tpu_info().vmem_capacity_bytes)
    except Exception:
        return 64 << 20            # conservative default: v7x per-TensorCore VMEM


def _plan(K: int, N: int, x_itemsize: int, w_itemsize: int):
    """Decide resident-weight vs streaming tiling and the VMEM limit."""
    tk, Kp = _tile(K, _TK, 128)
    cap = _vmem_capacity_bytes()
    budget = (3 * cap) // 4        # headroom: ~48 of 64 MiB per TC on v7x

    Np_res = _round_up(N, 128)
    # Conservative accounting: count the (never-refetched) weight block as
    # double-buffered, plus streamed x tiles, f32 output block and bias.
    resident_need = (2 * Kp * Np_res * w_itemsize
                     + 2 * _TM * tk * x_itemsize
                     + 2 * _TM * Np_res * 4
                     + 2 * Np_res * 4
                     + (1 << 20))
    if resident_need <= budget:
        return dict(resident=True, tk=tk, Kp=Kp, tn=Np_res, Np=Np_res,
                    vmem_limit=int(min(cap, max(resident_need, 32 << 20))))

    tn, Np = _tile(N, _TN, 128)
    stream_need = (2 * (_TM * tk * x_itemsize + tk * tn * w_itemsize
                        + tn * 4 + _TM * tn * 4) + (1 << 20))
    return dict(resident=False, tk=tk, Kp=Kp, tn=tn, Np=Np,
                vmem_limit=int(min(cap, max(stream_need, 32 << 20))))


def _pad2d(x, rows: int, cols: int):
    r, c = x.shape
    if (r, c) == (rows, cols):
        return x
    return jnp.pad(x, ((0, rows - r), (0, cols - c)))


# ----------------------------- Pallas kernels --------------------------------
def _resident_kernel(x_ref, w_ref, b_ref, o_ref, *, tk):
    """grid = (M/tm, K/tk). w_ref holds the full (Kp, Np) weight, VMEM-resident
    (constant index_map -> fetched from HBM exactly once). The f32 output block
    doubles as the accumulator: bias at k==0, += dot each k step."""
    k = pl.program_id(1)

    @pl.when(k == 0)
    def _init():
        o_ref[...] = jnp.broadcast_to(b_ref[...], o_ref.shape)

    off = pl.multiple_of(k * tk, tk)
    o_ref[...] += jnp.dot(x_ref[...], w_ref[pl.ds(off, tk), :],
                          preferred_element_type=jnp.float32)


def _stream_kernel(x_ref, w_ref, b_ref, o_ref):
    """grid = (M/tm, N/tn, K/tk). Weight tiles streamed from HBM (large-weight
    fallback). Same in-place f32 accumulation into the output block."""
    k = pl.program_id(2)

    @pl.when(k == 0)
    def _init():
        o_ref[...] = jnp.broadcast_to(b_ref[...], o_ref.shape)

    o_ref[...] += jnp.dot(x_ref[...], w_ref[...],
                          preferred_element_type=jnp.float32)


def _linear_pallas(x_p, w_p, b_p, *, tm, plan):
    """Core call. x_p:(Mp,Kp)  w_p:(Kp,Np)  b_p:(1,Np) — all pre-padded."""
    Mp, Kp = x_p.shape
    Np = w_p.shape[1]
    tk, tn = plan["tk"], plan["tn"]
    xs = jnp.dtype(x_p.dtype).itemsize
    ws = jnp.dtype(w_p.dtype).itemsize
    cost = pl.CostEstimate(
        flops=2 * Mp * Kp * Np, transcendentals=0,
        bytes_accessed=Mp * Kp * xs + Kp * Np * ws + Np * 4 + Mp * Np * 4)

    if plan["resident"]:
        grid = (Mp // tm, Kp // tk)
        kernel = functools.partial(_resident_kernel, tk=tk)
        in_specs = [
            pl.BlockSpec((tm, tk), lambda i, k: (i, k)),
            pl.BlockSpec((Kp, Np), lambda i, k: (0, 0)),   # fetched once, resident
            pl.BlockSpec((1, Np), lambda i, k: (0, 0)),
        ]
        out_specs = pl.BlockSpec((tm, Np), lambda i, k: (i, 0))
        semantics = ("parallel", "arbitrary")
    else:
        grid = (Mp // tm, Np // tn, Kp // tk)
        kernel = _stream_kernel
        in_specs = [
            pl.BlockSpec((tm, tk), lambda i, j, k: (i, k)),
            pl.BlockSpec((tk, tn), lambda i, j, k: (k, j)),
            pl.BlockSpec((1, tn), lambda i, j, k: (0, j)),
        ]
        out_specs = pl.BlockSpec((tm, tn), lambda i, j, k: (i, j))
        semantics = ("parallel", "parallel", "arbitrary")

    return pl.pallas_call(
        kernel,
        out_shape=jax.ShapeDtypeStruct((Mp, Np), jnp.float32),
        grid_spec=pltpu.PrefetchScalarGridSpec(
            num_scalar_prefetch=0,
            grid=grid,
            in_specs=in_specs,
            out_specs=out_specs,
        ),
        compiler_params=pltpu.CompilerParams(
            dimension_semantics=semantics,
            vmem_limit_bytes=plan["vmem_limit"],
        ),
        cost_estimate=cost,
    )(x_p, w_p, b_p)


def pallas_linear(x, weight, bias, compute_dtype=jnp.bfloat16,
                  small_fallback=False):
    """y = x @ weight.T + bias  (PyTorch nn.Linear convention), standalone wrapper.

    x:(B, out_dim)  weight:(num_classes, out_dim)  bias:(num_classes,).
    Set small_fallback=True in production small-batch inference to bypass
    Pallas for sub-tile problems (single-step pallas_call is pure launch cost).
    """
    M, K = x.shape
    N = weight.shape[0]
    if small_fallback and M * K * N <= 16 * 128 * 128:
        return (x.astype(jnp.float32) @ weight.T.astype(jnp.float32)
                + bias.astype(jnp.float32))

    itemsize = jnp.dtype(compute_dtype).itemsize
    plan = _plan(K, N, itemsize, itemsize)
    tm, Mp = _pick_m_tile(M)
    x_p = _pad2d(x.astype(compute_dtype), Mp, plan["Kp"])
    w_p = _pad2d(weight.T.astype(compute_dtype), plan["Kp"], plan["Np"])
    b_p = _pad2d(bias.astype(jnp.float32)[None, :], 1, plan["Np"])
    out = _linear_pallas(x_p, w_p, b_p, tm=tm, plan=plan)
    return out[:M, :N]


# ------------------------- create_linear_input (glue) -----------------------
def create_linear_input(x_tokens, use_n_blocks, use_avgpool, use_cls_token,
                        has_class_token=True):
    """JAX port of the PyTorch helper. x_tokens: (batch, layer, tokens, dim)."""
    if not has_class_token and (not use_avgpool):
        return False, None
    if use_cls_token and (not has_class_token):
        return False, None
    if (not use_cls_token) and (not use_avgpool):
        return False, None

    B = x_tokens.shape[0]
    intermediate = x_tokens[:, -use_n_blocks:, :, :]      # (B, n, T, D)
    if has_class_token:
        cls_feat = None
        avg_feat = None
        if use_cls_token:
            cls_feat = intermediate[:, :, 0, :].reshape(B, -1)
        if use_avgpool:
            # NOTE: the reference code literally takes token index 1 here
            # ("avgpool" slot), not an average over patch tokens — kept as-is.
            avg_feat = intermediate[:, :, 1, :].reshape(B, -1)
        if use_avgpool and use_cls_token:
            out = jnp.concatenate((cls_feat, avg_feat), axis=-1).reshape(B, -1)
        elif use_avgpool:
            out = avg_feat
        else:
            out = cls_feat
    else:
        out = jnp.mean(intermediate, axis=2).reshape(B, -1)
    return True, out


# ------------------------------ LinearClassifier ----------------------------
class LinearClassifier:
    """Linear layer on top of frozen ViT features (Pallas-backed forward).

    Parameters are kept in the PyTorch (num_classes, out_dim) f32 convention; a
    pre-transposed, lane-padded, compute-dtype (bf16 by default) copy is built
    ONCE at init so the forward never pays an HBM transpose, dtype cast or
    masked store for the weight. Accumulation is always f32.
    """

    def __init__(self, out_dim, num_classes, key, compute_dtype=jnp.bfloat16,
                 **output_kwargs):
        self.out_dim = out_dim
        self.num_classes = num_classes
        self.output_kwargs = output_kwargs
        self.compute_dtype = compute_dtype

        # weight ~ N(0, 0.01), bias = 0  (matches the PyTorch init)
        self.weight = 0.01 * jax.random.normal(key, (num_classes, out_dim),
                                               dtype=jnp.float32)
        self.bias = jnp.zeros((num_classes,), dtype=jnp.float32)

        itemsize = jnp.dtype(compute_dtype).itemsize
        self._plan = _plan(out_dim, num_classes, itemsize, itemsize)
        Kp, Np = self._plan["Kp"], self._plan["Np"]
        self._w_p = _pad2d(self.weight.T.astype(compute_dtype), Kp, Np)
        self._b_p = _pad2d(self.bias[None, :], 1, Np)

    def __call__(self, x_tokens):
        ret, output = create_linear_input(x_tokens, **self.output_kwargs)
        if not ret:
            raise RuntimeError("Linear layer returned no output.")
        if output.shape[-1] != self.out_dim:
            raise ValueError(
                f"Output shape {output.shape[-1]} does not match expected "
                f"input dimension {self.out_dim}")

        M, K = output.shape
        tm, Mp = _pick_m_tile(M)
        x_p = _pad2d(output.astype(self.compute_dtype), Mp, self._plan["Kp"])
        out = _linear_pallas(x_p, self._w_p, self._b_p, tm=tm, plan=self._plan)
        return out[:M, :self.num_classes]


# ----------------------------------- main ------------------------------------
if __name__ == "__main__":
    key = jax.random.PRNGKey(0)
    k_x, k_w = jax.random.split(key)

    # Small ViT-like token stack: (batch, layer, tokens, dim)
    B, L, T, D = 2, 4, 8, 32
    x_tokens = jax.random.normal(k_x, (B, L, T, D), dtype=jnp.float32)

    use_n_blocks = 2
    out_dim = 2 * use_n_blocks * D      # cls + "avgpool" slots concatenated
    num_classes = 10

    clf = LinearClassifier(
        out_dim, num_classes, k_w,
        use_n_blocks=use_n_blocks, use_avgpool=True,
        use_cls_token=True, has_class_token=True,
    )

    logits = clf(x_tokens)              # bf16 compute, f32 accumulate (Pallas)
    jax.block_until_ready(logits)

    # plain-JAX reference
    _, feats = create_linear_input(x_tokens, use_n_blocks=use_n_blocks,
                                   use_avgpool=True, use_cls_token=True,
                                   has_class_token=True)
    ref = feats @ clf.weight.T + clf.bias
    assert logits.shape == (B, num_classes)
    assert jnp.allclose(logits, ref, atol=1e-2, rtol=5e-2), \
        float(jnp.max(jnp.abs(logits - ref)))

    # standalone wrapper with f32 compute -> tight tolerance
    logits32 = pallas_linear(feats, clf.weight, clf.bias,
                             compute_dtype=jnp.float32)
    jax.block_until_ready(logits32)
    assert jnp.allclose(logits32, ref, atol=1e-4, rtol=1e-4)

    print("KERNEL_OK")
</pallas_src>

<mosaic_0001>
module attributes {stable_mosaic.version = 11 : i64} {
  func.func @_resident_kernel(%arg0: i32, %arg1: i32, %arg2: memref<16x128xbf16, #tpu.memory_space<vmem>>, %arg3: memref<128x128xbf16, #tpu.memory_space<vmem>>, %arg4: memref<1x128xf32, #tpu.memory_space<vmem>>, %arg5: memref<16x128xf32, #tpu.memory_space<vmem>>) attributes {dimension_semantics = [#tpu.dimension_semantics<parallel>, #tpu.dimension_semantics<arbitrary>], iteration_bounds = array<i64: 1, 1>, scalar_prefetch = 0 : i64, scratch_operands = 0 : i64, tpu.core_type = #tpu.core_type<tc>, window_params = [{transform_indices = @transform_0, window_bounds = array<i64: 16, 128>}, {pipeline_mode = #tpu.pipeline_mode<synchronous>, transform_indices = @transform_1, window_bounds = array<i64: 128, 128>}, {pipeline_mode = #tpu.pipeline_mode<synchronous>, transform_indices = @transform_2, window_bounds = array<i64: 1, 128>}, {transform_indices = @transform_3, window_bounds = array<i64: 16, 128>}]} {
    %c0_i32 = arith.constant 0 : i32
    %0 = arith.cmpi eq, %arg1, %c0_i32 : i32
    %1 = arith.extui %0 : i1 to i32
    %c0_i32_0 = arith.constant 0 : i32
    %2 = arith.cmpi ne, %1, %c0_i32_0 : i32
    scf.if %2 {
      %c0_7 = arith.constant 0 : index
      %c0_8 = arith.constant 0 : index
      %12 = vector.load %arg4[%c0_7, %c0_8] : memref<1x128xf32, #tpu.memory_space<vmem>>, vector<1x128xf32>
      %13 = vector.shape_cast %12 : vector<1x128xf32> to vector<1x128xf32>
      %14 = vector.broadcast %13 : vector<1x128xf32> to vector<16x128xf32>
      %c0_9 = arith.constant 0 : index
      %c0_10 = arith.constant 0 : index
      %15 = vector.load %arg5[%c0_9, %c0_10] : memref<16x128xf32, #tpu.memory_space<vmem>>, vector<16x128xf32>
      tpu.vector_store %arg5[%c0_9, %c0_10], %14 {strides = array<i32>} : memref<16x128xf32, #tpu.memory_space<vmem>>, vector<16x128xf32>,
    } else {
    }
    %c128_i32 = arith.constant 128 : i32
    %3 = arith.muli %arg1, %c128_i32 : i32
    %4 = tpu.assume_multiple %3, 128 : i32
    %c0 = arith.constant 0 : index
    %c0_1 = arith.constant 0 : index
    %5 = vector.load %arg5[%c0, %c0_1] : memref<16x128xf32, #tpu.memory_space<vmem>>, vector<16x128xf32>
    %c0_2 = arith.constant 0 : index
    %c0_3 = arith.constant 0 : index
    %6 = vector.load %arg2[%c0_2, %c0_3] : memref<16x128xbf16, #tpu.memory_space<vmem>>, vector<16x128xbf16>
    %7 = arith.index_cast %4 : i32 to index
    %c0_4 = arith.constant 0 : index
    %8 = vector.load %arg3[%7, %c0_4] : memref<128x128xbf16, #tpu.memory_space<vmem>>, vector<128x128xbf16>
    %cst = arith.constant dense<0.000000e+00> : vector<16x128xf32>
    %9 = tpu.matmul %6, %8, %cst {dimension_numbers = #tpu.dot_dimension_numbers<[1], [0], [0], [1], [0, 0, 1, 1], [], []>} : vector<16x128xbf16>, vector<128x128xbf16>, vector<16x128xf32> -> vector<16x128xf32>
    %10 = arith.addf %5, %9 : vector<16x128xf32>
    %c0_5 = arith.constant 0 : index
    %c0_6 = arith.constant 0 : index
    %11 = vector.load %arg5[%c0_5, %c0_6] : memref<16x128xf32, #tpu.memory_space<vmem>>, vector<16x128xf32>
    tpu.vector_store %arg5[%c0_5, %c0_6], %10 {strides = array<i32>} : memref<16x128xf32, #tpu.memory_space<vmem>>, vector<16x128xf32>,
    return
  }
  func.func @transform_0(%arg0: i32, %arg1: i32) -> (i32, i32) {
    %c0_i32 = arith.constant 0 : i32
    return %arg0, %arg1 : i32, i32
  }
  func.func @transform_1(%arg0: i32, %arg1: i32) -> (i32, i32) {
    %c0_i32 = arith.constant 0 : i32
    %c0_i32_0 = arith.constant 0 : i32
    %c0_i32_1 = arith.constant 0 : i32
    return %c0_i32, %c0_i32_0 : i32, i32
  }
  func.func @transform_2(%arg0: i32, %arg1: i32) -> (i32, i32) {
    %c0_i32 = arith.constant 0 : i32
    %c0_i32_0 = arith.constant 0 : i32
    %c0_i32_1 = arith.constant 0 : i32
    return %c0_i32, %c0_i32_0 : i32, i32
  }
  func.func @transform_3(%arg0: i32, %arg1: i32) -> (i32, i32) {
    %c0_i32 = arith.constant 0 : i32
    %c0_i32_0 = arith.constant 0 : i32
    return %arg0, %c0_i32 : i32, i32
  }
}

</mosaic_0001>

<llo_original>
// kernel: tpu_custom_call.1
$region0: #{tpu_custom_call.1}
  #allocation0 [shape = 'u32[]', space=smem, size = 0x4, offset = 0x4, fixed_abs, tag = 'smem constant byte address 0x4 - core index']
  #allocation1 [shape = 'u32[144,128]{1,0:T(1,128)}', space=vmem, size = 0x12000, scoped, tag = 'internal scratch']
  %s0 = inlined_call_operand.hbm [shape: bf16[16,128], index: 0, kind: input, shape index: {}]
  %s1 = inlined_call_operand.hbm [shape: bf16[128,128], index: 1, kind: input, shape index: {}]
  %s2 = inlined_call_operand.vmem [shape: f32[1,128], index: 2, kind: input, shape index: {}]
  %s3 = inlined_call_operand.hbm [shape: f32[16,128], index: 3, kind: output, shape index: {}]
  %s4 = sld [smem:[#allocation0]]
  $region34: #{tpu_custom_call.1} parent=0
    _
  %s6 = ssub.s32 1, %s4
  %s7 = scalar_select 0, %s6, %s4
  $region1: #{tpu_custom_call.1} parent=0
    #allocation2 [shape = 'u8[4096]{0}', space=vmem, size = 0x1000, scoped, tag = 'input window, operand 0, single buffered']
    #allocation3 [shape = 's32[1]{0}', space=sflag, size = 0x4, scoped, tag = 'scoped memory for tpu_custom_call.1']
    #allocation4 [shape = 's32[1]{0}', space=sflag, size = 0x4, scoped, tag = 'scoped memory for tpu_custom_call.1']
    #allocation5 [shape = 'u8[32768]{0}', space=vmem, size = 0x8000, scoped, tag = 'input window, operand 1, single buffered']
    #allocation6 [shape = 's32[1]{0}', space=sflag, size = 0x4, scoped, tag = 'scoped memory for tpu_custom_call.1']
    #allocation7 [shape = 'u8[8192]{0}', space=vmem, size = 0x2000, scoped, tag = 'output window, operand 0, single buffered']
    %8 = vsyncpa [#allocation3], 0
    %9 = vsyncpa [#allocation6], 0
    %10 = vsyncpa [#allocation4], 0
    // Predicated region
    $region2: #{tpu_custom_call.1} parent=1 // pred_check
      _
    $region3: #{tpu_custom_call.1} parent=1 // pred_check_branch
      %12 = sbr.rel (0) target = $region5
    $region4: #{tpu_custom_call.1} parent=1 // pred_region
      %s14 = ssub.s32 128, 128
      %15 = vsyncadd [#allocation3], %s14
      %s16 = sshll.u32 [#allocation2], 4
      %s17 = int_to_ptr.vmem [resolvable:$true] %s16
      %22 = dma.hbm_to_vmem [thread:$0]  %s0, 128, %s17, [#allocation3], 64, 64, 4
    $region5: #{tpu_custom_call.1} parent=1 // pred_fallthru
      _
    // Predicated region
    $region6: #{tpu_custom_call.1} parent=1 // pred_check
      _
    $region7: #{tpu_custom_call.1} parent=1 // pred_check_branch
      %24 = sbr.rel (0) target = $region9
    $region8: #{tpu_custom_call.1} parent=1 // pred_region
      %s26 = ssub.s32 1024, 1024
      %27 = vsyncadd [#allocation6], %s26
      %s28 = sshll.u32 [#allocation5], 4
      %s29 = int_to_ptr.vmem [resolvable:$true] %s28
      %34 = dma.hbm_to_vmem [thread:$0]  %s1, 1024, %s29, [#allocation6], 64, 64, 4
    $region9: #{tpu_custom_call.1} parent=1 // pred_fallthru
      _
    // Predicated region
    $region10: #{tpu_custom_call.1} parent=1 // pred_check
      _
    $region11: #{tpu_custom_call.1} parent=1 // pred_check_branch
      %36 = sbr.rel (0) target = $region13
    $region12: #{tpu_custom_call.1} parent=1 // pred_region
      _
    $region13: #{tpu_custom_call.1} parent=1 // pred_fallthru
      _
    // Predicated region
    $region14: #{tpu_custom_call.1} parent=1 // pred_check
      _
    $region15: #{tpu_custom_call.1} parent=1 // pred_check_branch
      %38 = sbr.rel (0) target = $region17
    $region16: #{tpu_custom_call.1} parent=1 // pred_region
      %39 = dma.done [#allocation3], 128
    $region17: #{tpu_custom_call.1} parent=1 // pred_fallthru
      _
    // Predicated region
    $region18: #{tpu_custom_call.1} parent=1 // pred_check
      _
    $region19: #{tpu_custom_call.1} parent=1 // pred_check_branch
      %41 = sbr.rel (0) target = $region21
    $region20: #{tpu_custom_call.1} parent=1 // pred_region
      %42 = dma.done [#allocation6], 1024
    $region21: #{tpu_custom_call.1} parent=1 // pred_fallthru
      _
    %p44 = scmp.eq.s32.totalorder 0, 0
    // Predicated region
    $region22: #{tpu_custom_call.1} parent=1 // pred_check
      %p45 = pneg %p44
    $region23: #{tpu_custom_call.1} parent=1 // pred_check_branch
      %47 = sbr.rel (%p45) target = $region25
    $region24: #{tpu_custom_call.1} parent=1 // pred_region
      %v48 = vld [vmem:[%s2] sm:$0x1]
      %v50 = vlaneseq
      %v51 = vshrl.u32 %v50, 7
      %v52 = vsub.s32 0, %v51
      %v53 = vrot.slane %v48, %v52
      %55 = vst [vmem:[#allocation7] sm:$0xff] %v53
      %56 = vst [vmem:[#allocation7 + $0x8] sm:$0xff] %v53
    $region25: #{tpu_custom_call.1} parent=1 // pred_fallthru
      _
    %s57 = smul.u32 0, 128
    %v58 = vld [vmem:[#allocation7] sm:$0xff]
    %v59 = vld [vmem:[#allocation7 + $0x8] sm:$0xff]
    %v60 = vld [vmem:[#allocation2] sm:$0xf]
    %v61 = vld [vmem:[#allocation2 + $0x4] sm:$0xf]
    %s62 = sshra.s32 %s57, 3
    %s63 = sand.u32 %s57, 7
    %s64 = smul.addr %s62, 4
    %s65 = scalar_lea.vmem [#allocation5], %s64
    %v66 = vld [vmem:[%s65] sm:$0xf]
    %v67 = vld [vmem:[%s65 + $0x4] sm:$0xf]
    %v68 = vld [vmem:[%s65 + $0x8] sm:$0xf]
    %v69 = vld [vmem:[%s65 + $0xc] sm:$0xf]
    %v70 = vld [vmem:[%s65 + $0x10] sm:$0xf]
    %v71 = vld [vmem:[%s65 + $0x14] sm:$0xf]
    %v72 = vld [vmem:[%s65 + $0x18] sm:$0xf]
    %v73 = vld [vmem:[%s65 + $0x1c] sm:$0xf]
    %v74 = vld [vmem:[%s65 + $0x20] sm:$0xf]
    %v75 = vld [vmem:[%s65 + $0x24] sm:$0xf]
    %v76 = vld [vmem:[%s65 + $0x28] sm:$0xf]
    %v77 = vld [vmem:[%s65 + $0x2c] sm:$0xf]
    %v78 = vld [vmem:[%s65 + $0x30] sm:$0xf]
    %v79 = vld [vmem:[%s65 + $0x34] sm:$0xf]
    %v80 = vld [vmem:[%s65 + $0x38] sm:$0xf]
    %v81 = vld [vmem:[%s65 + $0x3c] sm:$0xf]
    %v84 = vunpack.c.l.b16 %v60
    %v85 = vunpack.c.l.b16 %v61
    %v86 = vpack.c.b16 %v85, %v84
    %v104 = vunpack.c.l.b16 %v66
    %v105 = vunpack.c.l.b16 %v67
    %v106 = vunpack.c.l.b16 %v68
    %v107 = vunpack.c.l.b16 %v69
    %v108 = vunpack.c.l.b16 %v70
    %v109 = vunpack.c.l.b16 %v71
    %v110 = vunpack.c.l.b16 %v72
    %v111 = vunpack.c.l.b16 %v73
    %v112 = vunpack.c.l.b16 %v74
    %v113 = vunpack.c.l.b16 %v75
    %v114 = vunpack.c.l.b16 %v76
    %v115 = vunpack.c.l.b16 %v77
    %v116 = vunpack.c.l.b16 %v78
    %v117 = vunpack.c.l.b16 %v79
    %v118 = vunpack.c.l.b16 %v80
    %v119 = vunpack.c.l.b16 %v81
    %v120 = vpack.c.b16 %v105, %v104
    %v121 = vpack.c.b16 %v107, %v106
    %v122 = vpack.c.b16 %v109, %v108
    %v123 = vpack.c.b16 %v111, %v110
    %v124 = vpack.c.b16 %v113, %v112
    %v125 = vpack.c.b16 %v115, %v114
    %v126 = vpack.c.b16 %v117, %v116
    %v127 = vpack.c.b16 %v119, %v118
    %136 = vmatprep.subr.bf16.mxu0 0
    %137 = vmatpush1.bf16.msra.mxu0 %v120
    %138 = vmatprep.subr.bf16.mxu0 0
    %139 = vmatpush1.bf16.msra.mxu0 %v121
    %140 = vmatprep.subr.bf16.mxu0 0
    %141 = vmatpush1.bf16.msra.mxu0 %v122
    %142 = vmatprep.subr.bf16.mxu0 0
    %143 = vmatpush1.bf16.msra.mxu0 %v123
    %144 = vmatprep.subr.bf16.mxu0 0
    %145 = vmatpush1.bf16.msra.mxu0 %v124
    %146 = vmatprep.subr.bf16.mxu0 0
    %147 = vmatpush1.bf16.msra.mxu0 %v125
    %148 = vmatprep.subr.bf16.mxu0 0
    %149 = vmatpush1.bf16.msra.mxu0 %v126
    %150 = vmatprep.subr.bf16.mxu0 0
    %151 = vmatpush1.bf16.msra.mxu0 %v127
    %152 = vmatprep.subr.bf16.mxu0 0
    %153 = vmatpush1.bf16.msra.mxu0 0
    %154 = vmatprep.subr.bf16.mxu0 0
    %155 = vmatpush1.bf16.msra.mxu0 0
    %156 = vmatprep.subr.bf16.mxu0 0
    %157 = vmatpush1.bf16.msra.mxu0 0
    %158 = vmatprep.subr.bf16.mxu0 0
    %159 = vmatpush1.bf16.msra.mxu0 0
    %160 = vmatprep.subr.bf16.mxu0 0
    %161 = vmatpush1.bf16.msra.mxu0 0
    %162 = vmatprep.subr.bf16.mxu0 0
    %163 = vmatpush1.bf16.msra.mxu0 0
    %164 = vmatprep.subr.bf16.mxu0 0
    %165 = vmatpush1.bf16.msra.mxu0 0
    %166 = vmatprep.subr.bf16.mxu0 0
    %167 = vmatpush1.bf16.msra.mxu0 0
    %168 = vmatprep.mubr.bf16.mxu0 0
    %169 = vmatmul.mubr.bf16.gmra.mrb[0].mxu0 %v86
    %v170 = vpop.f32.mrb[0].mxu0
    %v171 = vadd.f32 0.0, %v170
    %v172 = vpop.f32.mrb[0].mxu0
    %v173 = vpop.f32.mrb[0].mxu0
    %v174 = vadd.f32 0.0, %v173
    %v175 = vpop.f32.mrb[0].mxu0
    %176 = vdwg.mxu0
    %v177 = vadd.f32 %v58, %v171
    %v178 = vadd.f32 %v59, %v174
    %179 = vst [vmem:[#allocation7] sm:$0xff] %v177
    %180 = vst [vmem:[#allocation7 + $0x8] sm:$0xff] %v178
    // Predicated region
    $region26: #{tpu_custom_call.1} parent=1 // pred_check
      _
    $region27: #{tpu_custom_call.1} parent=1 // pred_check_branch
      %182 = sbr.rel (0) target = $region29
    $region28: #{tpu_custom_call.1} parent=1 // pred_region
      %s184 = ssub.s32 256, 256
      %185 = vsyncadd [#allocation4], %s184
      %s186 = sshll.u32 [#allocation7], 4
      %s187 = int_to_ptr.vmem [resolvable:$true] %s186
      %192 = dma.vmem_to_hbm [thread:$0]  %s187, 256, %s3, [#allocation4], 128, 128, 8
    $region29: #{tpu_custom_call.1} parent=1 // pred_fallthru
      _
    // Predicated region
    $region30: #{tpu_custom_call.1} parent=1 // pred_check
      _
    $region31: #{tpu_custom_call.1} parent=1 // pred_check_branch
      %194 = sbr.rel (0) target = $region33
    $region32: #{tpu_custom_call.1} parent=1 // pred_region
      %195 = dma.done [#allocation4], 256
    $region33: #{tpu_custom_call.1} parent=1 // pred_fallthru
      _
    %196 = vsyncpa [#allocation3], 1
    %197 = vsyncpa [#allocation6], 1
    %198 = vsyncpa [#allocation4], 1

</llo_original>
